<compile_context>
chip_gen: v6e
topology: v6e:2x2x1
jax: 0.10.0
libtpu: 0.0.40
codegen_flags: <defaults>
</compile_context>

<pallas_src>
import math
from functools import partial

import jax
import jax.numpy as jnp
from jax.experimental import pallas as pl
from jax.experimental.pallas import tpu as pltpu

# ----------------------------------------------------------------------------- config
NUM_CLASSES = 4                 # includes background class 0
MID_CHANNELS = 32
POOL_SIZE = 7
SAMPLING_RATIO = 2
REG_WEIGHTS = (10.0, 10.0, 5.0, 5.0)
SCORE_THRESH = 0.05
NMS_THRESH = 0.6
NUM_DETECTIONS = 4
MIN_SIZE = 1.0
BBOX_XFORM_CLIP = math.log(1000.0 / 16.0)
SLAB_WIDTH = 128                # lane-dense output width of the fused kernel


def _round_up(v, m):
    return ((v + m - 1) // m) * m


def _full_spec(arr):
    n = arr.ndim
    return pl.BlockSpec(arr.shape, lambda i, n=n: (0,) * n)


# ----------------------------------------------------------------------------- fused Pallas kernel
def fused_predict_decode_pallas(x_pad, prop_pad, kparams, image_shape):
    """fc1+relu, fc2+relu, fused+regrouped cls/box head, softmax, BoxCoder.decode,
    clip-to-image, min-size mask — one pallas_call, one lane-dense (n_pad, 128) store.

    Slab column layout (ncls = NUM_CLASSES):
      [0, ncls)          class probabilities
      [ncls, 2*ncls)     per-class xmin
      [2*ncls, 3*ncls)   per-class ymin
      [3*ncls, 4*ncls)   per-class xmax
      [4*ncls, 5*ncls)   per-class ymax
      [5*ncls, 6*ncls)   per-class min-size ok flag (0/1)
      [6*ncls, 128)      zero padding (keeps the HBM writeback unmasked)
    """
    w1, b1, w2, b2, whd, bhd = kparams
    n_pad = x_pad.shape[0]
    ncls = NUM_CLASSES
    img_h, img_w = float(image_shape[0]), float(image_shape[1])
    inv_wx, inv_wy, inv_ww, inv_wh = (1.0 / float(v) for v in REG_WEIGHTS)

    def kernel(x_ref, w1_ref, b1_ref, w2_ref, b2_ref, whd_ref, bhd_ref, prop_ref, out_ref):
        # ---- MLP: bf16 operands, f32 MXU accumulation; every matmul is 128-lane dense ----
        h1 = jnp.maximum(
            jnp.dot(x_ref[...], w1_ref[...], preferred_element_type=jnp.float32)
            + b1_ref[...], 0.0)
        h2 = jnp.maximum(
            jnp.dot(h1.astype(jnp.bfloat16), w2_ref[...],
                    preferred_element_type=jnp.float32) + b2_ref[...], 0.0)
        head = jnp.dot(h2.astype(jnp.bfloat16), whd_ref[...],
                       preferred_element_type=jnp.float32) + bhd_ref[...]      # (N, 128)
        # `head` columns: [logits(ncls) | dx(ncls) | dy(ncls) | dw(ncls) | dh(ncls) | 0-pad]

        # ---- softmax over logit lanes; reductions stay on the full 128-lane tile ----
        lane = jax.lax.broadcasted_iota(jnp.int32, head.shape, 1)
        masked = jnp.where(lane < ncls, head, -1e30)
        mx = jnp.max(masked, axis=-1, keepdims=True)
        e = jnp.exp(masked - mx)                                               # pad lanes -> 0
        inv_den = pl.reciprocal(jnp.sum(e, axis=-1, keepdims=True), approx=True)
        probs = e[:, 0:ncls] * inv_den                                         # (N, ncls)

        # ---- BoxCoder.decode + process_box for ALL classes at once on (N, ncls) blocks ----
        p = prop_ref[...]                                                      # (N, 4)
        bw = jnp.broadcast_to(p[:, 2:3] - p[:, 0:1], (n_pad, ncls))
        bh = jnp.broadcast_to(p[:, 3:4] - p[:, 1:2], (n_pad, ncls))
        cx = jnp.broadcast_to(p[:, 0:1], (n_pad, ncls)) + 0.5 * bw
        cy = jnp.broadcast_to(p[:, 1:2], (n_pad, ncls)) + 0.5 * bh

        dx = head[:, ncls:2 * ncls] * inv_wx
        dy = head[:, 2 * ncls:3 * ncls] * inv_wy
        dw = jnp.minimum(head[:, 3 * ncls:4 * ncls] * inv_ww, BBOX_XFORM_CLIP)  # torch clamp(max=)
        dh = jnp.minimum(head[:, 4 * ncls:5 * ncls] * inv_wh, BBOX_XFORM_CLIP)

        pcx = dx * bw + cx
        pcy = dy * bh + cy
        pw = jnp.exp(dw) * bw
        ph = jnp.exp(dh) * bh

        xmin = jnp.clip(pcx - 0.5 * pw, 0.0, img_w)
        xmax = jnp.clip(pcx + 0.5 * pw, 0.0, img_w)
        ymin = jnp.clip(pcy - 0.5 * ph, 0.0, img_h)
        ymax = jnp.clip(pcy + 0.5 * ph, 0.0, img_h)
        ok = (((xmax - xmin) >= MIN_SIZE) &
              ((ymax - ymin) >= MIN_SIZE)).astype(jnp.float32)

        # ---- one in-register slab assembly, one unmasked lane-dense store ----
        zpad = jnp.zeros((n_pad, SLAB_WIDTH - 6 * ncls), jnp.float32)
        out_ref[...] = jnp.concatenate([probs, xmin, ymin, xmax, ymax, ok, zpad], axis=-1)

    ins = (x_pad, w1, b1, w2, b2, whd, bhd, prop_pad)
    # NOTE(real sizes): for Mask R-CNN dims (K=12544, mid=1024, ~1000 proposals) replace
    # grid=(1,) with a tiled grid — proposal axis leading & "parallel" (shards across
    # v7x's 2 TensorCores), K trailing & "arbitrary" with an f32 VMEM accumulator (P3).
    # v7x (64 MiB VMEM): M_tile=256, K_tile=2048; v6e: w1 fully resident, M_tile=256,
    # K untiled; v5e: M_tile=128-256, K_tile=1024-2048 — and set vmem_limit_bytes
    # explicitly in all three cases.
    return pl.pallas_call(
        kernel,
        grid=(1,),
        in_specs=[_full_spec(a) for a in ins],
        out_specs=pl.BlockSpec((n_pad, SLAB_WIDTH), lambda i: (0, 0)),
        out_shape=jax.ShapeDtypeStruct((n_pad, SLAB_WIDTH), jnp.float32),
        compiler_params=pltpu.CompilerParams(dimension_semantics=("arbitrary",)),
    )(*ins)


# ----------------------------------------------------------------------------- RoIAlign via interpolation matmuls
def roi_align_mxu(feature, proposal, image_shape,
                  output_size=POOL_SIZE, sampling_ratio=SAMPLING_RATIO):
    """RoIAlign expressed as separable one-hot bilinear-interpolation matrices + two dots.

    pooled[n, c, p, q] = sum_{h,w} Ay[n, p, h] * feat[c, h, w] * Ax[n, q, w]
    (mathematically identical to the gather-based bilinear + s x s average pooling).
    """
    # TODO(synk): the contraction stays as XLA einsums (they lower to MXU dots); fusing it
    # into the Pallas kernel would require an in-kernel (C,7,7)->(C*49) relayout that is
    # cheaper done by XLA between the two dots.
    _, c, h, w = feature.shape
    feat = feature[0]
    # torchvision-style scale inference: round (not truncate) log2 of the feature/image ratio.
    scale_h = 2.0 ** round(math.log2(h / image_shape[0]))
    scale_w = 2.0 ** round(math.log2(w / image_shape[1]))
    assert scale_h == scale_w  # TODO(synk): non-square FPN strides / per-axis scales not handled.
    spatial_scale = scale_h
    out = output_size
    s = sampling_ratio

    def interp_matrix(coords, size):
        valid = (coords >= -1.0) & (coords <= size)
        cc = jnp.maximum(coords, 0.0)
        low = jnp.minimum(jnp.floor(cc).astype(jnp.int32), size - 1)
        high = jnp.minimum(low + 1, size - 1)
        cc = jnp.where(low >= size - 1, low.astype(jnp.float32), cc)
        frac = cc - low.astype(jnp.float32)
        vf = valid.astype(jnp.float32)
        w_low = ((1.0 - frac) * vf)[:, None] * jax.nn.one_hot(low, size, dtype=jnp.float32)
        w_high = (frac * vf)[:, None] * jax.nn.one_hot(high, size, dtype=jnp.float32)
        m = w_low + w_high                                      # (out*s, size)
        return m.reshape(out, s, size).mean(axis=1)             # (out, size), s-sample average

    def one_roi(roi):
        x1, y1, x2, y2 = (roi[0] * spatial_scale, roi[1] * spatial_scale,
                          roi[2] * spatial_scale, roi[3] * spatial_scale)
        roi_w = jnp.maximum(x2 - x1, 1.0)
        roi_h = jnp.maximum(y2 - y1, 1.0)
        bin_w = roi_w / out
        bin_h = roi_h / out
        pidx = jnp.arange(out, dtype=jnp.float32)
        sidx = jnp.arange(s, dtype=jnp.float32)
        ys = (y1 + pidx[:, None] * bin_h + (sidx[None, :] + 0.5) * bin_h / s).reshape(-1)
        xs = (x1 + pidx[:, None] * bin_w + (sidx[None, :] + 0.5) * bin_w / s).reshape(-1)
        return interp_matrix(ys, h), interp_matrix(xs, w)

    ay, ax = jax.vmap(one_roi)(proposal)                        # (N, 7, H), (N, 7, W)
    t = jnp.einsum('nph,chw->ncpw', ay, feat)                   # MXU dot
    pooled = jnp.einsum('ncpw,nqw->ncpq', t, ax)                # MXU dot
    return pooled                                               # (N, C, 7, 7)


# ----------------------------------------------------------------------------- NMS (vmapped over classes)
def _box_iou(boxes):
    area = (boxes[:, 2] - boxes[:, 0]) * (boxes[:, 3] - boxes[:, 1])
    lt = jnp.maximum(boxes[:, None, :2], boxes[None, :, :2])
    rb = jnp.minimum(boxes[:, None, 2:], boxes[None, :, 2:])
    wh = jnp.clip(rb - lt, 0.0)
    inter = wh[..., 0] * wh[..., 1]
    union = area[:, None] + area[None, :] - inter
    return jnp.where(union > 0.0, inter / jnp.maximum(union, 1e-9), 0.0)


def _nms_topk(boxes, scores, valid, *, iou_thresh, k):
    # TODO(synk): greedy NMS is inherently sequential/data-dependent; kept as a
    # lax.fori_loop (batched over classes with vmap) rather than a Pallas kernel.
    iou = _box_iou(boxes)
    sc = jnp.where(valid, scores, -1.0)

    def body(i, state):
        active, idxs, vmask = state
        s = jnp.where(active, sc, -jnp.inf)
        j = jnp.argmax(s)
        ok = s[j] >= 0.0
        idxs = idxs.at[i].set(j.astype(jnp.int32))
        vmask = vmask.at[i].set(ok)
        new_active = (active & (iou[j] <= iou_thresh)).at[j].set(False)
        active = jnp.where(ok, new_active, active)
        return active, idxs, vmask

    init = (valid, jnp.zeros((k,), jnp.int32), jnp.zeros((k,), bool))
    _, idxs, vmask = jax.lax.fori_loop(0, k, body, init)
    return idxs, vmask


# ----------------------------------------------------------------------------- params & forward
def prepare_params(params, num_classes=NUM_CLASSES):
    """One-time (model-load) prep: fuse + coordinate-regroup the cls/box head, pad all
    matmul operands to lane-dense widths (K / mid / head-out -> multiples of 128) and
    cast MXU operands to bf16.  Hoisted OUT of the jitted forward (no per-call HBM traffic)."""
    w1, b1, w2, b2, wc, bc, wb, bb = params
    ncls = num_classes
    k_in, mid = w1.shape
    k_pad = _round_up(k_in, 128)
    mid_pad = _round_up(mid, 128)

    # regroup box-delta columns: class-major (c0x,c0y,c0w,c0h, c1x,...) -> coordinate-major
    # (dx[all classes] | dy | dw | dh) so the kernel decodes with (N, ncls)-wide slices.
    wb_g = wb.reshape(mid, ncls, 4).transpose(0, 2, 1).reshape(mid, 4 * ncls)
    bb_g = bb.reshape(1, ncls, 4).transpose(0, 2, 1).reshape(1, 4 * ncls)
    whd = jnp.concatenate([wc, wb_g], axis=1)                        # (mid, 5*ncls)
    bhd = jnp.concatenate([bc, bb_g], axis=1)                        # (1,   5*ncls)

    w1p = jnp.pad(w1, ((0, k_pad - k_in), (0, mid_pad - mid))).astype(jnp.bfloat16)
    b1p = jnp.pad(b1, ((0, 0), (0, mid_pad - mid))).astype(jnp.float32)
    w2p = jnp.pad(w2, ((0, mid_pad - mid), (0, mid_pad - mid))).astype(jnp.bfloat16)
    b2p = jnp.pad(b2, ((0, 0), (0, mid_pad - mid))).astype(jnp.float32)
    whdp = jnp.pad(whd, ((0, mid_pad - mid), (0, SLAB_WIDTH - 5 * ncls))).astype(jnp.bfloat16)
    bhdp = jnp.pad(bhd, ((0, 0), (0, SLAB_WIDTH - 5 * ncls))).astype(jnp.float32)
    return (w1p, b1p, w2p, b2p, whdp, bhdp)


@partial(jax.jit, static_argnums=(2,))
def roi_heads_forward(feature, proposal, image_shape, kparams):
    ncls = NUM_CLASSES
    pooled = roi_align_mxu(feature, proposal, image_shape)           # (N, C, 7, 7)
    n = pooled.shape[0]
    x = pooled.reshape(n, -1)                                        # torch .flatten(1), NCHW order

    k_pad = kparams[0].shape[0]
    n_pad = max(16, _round_up(n, 16))                                # bf16 sublane packing
    x_pad = jnp.pad(x, ((0, n_pad - n), (0, k_pad - x.shape[1]))).astype(jnp.bfloat16)
    prop_pad = jnp.pad(proposal, ((0, n_pad - n), (0, 0))).astype(jnp.float32)

    slab = fused_predict_decode_pallas(x_pad, prop_pad, kparams, image_shape)[:n]
    probs = slab[:, 0:ncls]                                          # (N, ncls)
    xmin = slab[:, ncls:2 * ncls]
    ymin = slab[:, 2 * ncls:3 * ncls]
    xmax = slab[:, 3 * ncls:4 * ncls]
    ymax = slab[:, 4 * ncls:5 * ncls]
    sizeok = slab[:, 5 * ncls:6 * ncls].T                            # (ncls, N)
    boxes = jnp.stack([xmin, ymin, xmax, ymax], axis=-1).transpose(1, 0, 2)   # (ncls, N, 4)

    # foreground classes 1..ncls-1, as in the PyTorch per-class loop (here batched via vmap)
    fg_scores = probs[:, 1:].T                                       # (ncls-1, N)
    fg_boxes = boxes[1:]
    fg_ok = sizeok[1:]
    valid = (fg_ok > 0.5) & (fg_scores >= SCORE_THRESH)

    nms_fn = jax.vmap(partial(_nms_topk, iou_thresh=NMS_THRESH, k=NUM_DETECTIONS))
    idxs, vmask = nms_fn(fg_boxes, fg_scores, valid)                 # (ncls-1, k)
    vf = vmask.astype(jnp.float32)
    sel_boxes = jnp.take_along_axis(fg_boxes, idxs[:, :, None], axis=1) * vf[:, :, None]
    sel_scores = jnp.take_along_axis(fg_scores, idxs, axis=1) * vf
    labels = jnp.arange(1, ncls, dtype=jnp.int32)[:, None] * vmask.astype(jnp.int32)

    # NOTE: torch returns dynamically-sized concatenations; here fixed (ncls-1)*k rows + `valid` mask.
    result = dict(boxes=sel_boxes.reshape(-1, 4),
                  labels=labels.reshape(-1),
                  scores=sel_scores.reshape(-1),
                  valid=vmask.reshape(-1))
    losses = {}
    # has_mask() is False (mask_roi_pool is None) -> no mask branch, matching the module default.
    return result, losses


def init_params(key, in_channels, mid_channels, num_classes):
    ks = jax.random.split(key, 4)

    def lin(k, fan_in, fan_out):
        w = jax.random.normal(k, (fan_in, fan_out), jnp.float32) * (1.0 / math.sqrt(fan_in))
        b = jnp.zeros((1, fan_out), jnp.float32)
        return w, b

    w1, b1 = lin(ks[0], in_channels, mid_channels)
    w2, b2 = lin(ks[1], mid_channels, mid_channels)
    wc, bc = lin(ks[2], mid_channels, num_classes)
    wb, bb = lin(ks[3], mid_channels, num_classes * 4)
    return (w1, b1, w2, b2, wc, bc, wb, bb)


if __name__ == "__main__":
    key = jax.random.PRNGKey(0)
    k_feat, k_ctr, k_sz, k_par = jax.random.split(key, 4)

    C, H, W = 16, 16, 16
    N_ROI = 8
    image_shape = (H, W)

    feature = jax.random.normal(k_feat, (1, C, H, W), jnp.float32)   # layout: NCHW
    centers = jax.random.uniform(k_ctr, (N_ROI, 2), minval=3.0, maxval=13.0)
    halves = jax.random.uniform(k_sz, (N_ROI, 2), minval=1.0, maxval=5.0)
    proposal = jnp.concatenate([centers - halves, centers + halves], axis=1)
    proposal = jnp.clip(proposal, 0.0, float(W))                     # (x1, y1, x2, y2)

    params = init_params(k_par, C * POOL_SIZE * POOL_SIZE, MID_CHANNELS, NUM_CLASSES)
    kparams = prepare_params(params)                                 # model-load-time prep (not jitted)

    result, losses = roi_heads_forward(feature, proposal, image_shape, kparams)
    jax.block_until_ready(result["boxes"])
    jax.block_until_ready(result["scores"])
    jax.block_until_ready(result["labels"])
    print("KERNEL_OK")
</pallas_src>

<mosaic_0001>
module attributes {stable_mosaic.version = 11 : i64} {
  func.func @kernel(%arg0: i32, %arg1: memref<16x896xbf16, #tpu.memory_space<vmem>>, %arg2: memref<896x128xbf16, #tpu.memory_space<vmem>>, %arg3: memref<1x128xf32, #tpu.memory_space<vmem>>, %arg4: memref<128x128xbf16, #tpu.memory_space<vmem>>, %arg5: memref<1x128xf32, #tpu.memory_space<vmem>>, %arg6: memref<128x128xbf16, #tpu.memory_space<vmem>>, %arg7: memref<1x128xf32, #tpu.memory_space<vmem>>, %arg8: memref<16x4xf32, #tpu.memory_space<vmem>>, %arg9: memref<16x128xf32, #tpu.memory_space<vmem>>) attributes {dimension_semantics = [#tpu.dimension_semantics<arbitrary>], iteration_bounds = array<i64: 1>, scalar_prefetch = 0 : i64, scratch_operands = 0 : i64, tpu.core_type = #tpu.core_type<tc>, window_params = [{pipeline_mode = #tpu.pipeline_mode<synchronous>, transform_indices = @transform_0, window_bounds = array<i64: 16, 896>}, {pipeline_mode = #tpu.pipeline_mode<synchronous>, transform_indices = @transform_1, window_bounds = array<i64: 896, 128>}, {pipeline_mode = #tpu.pipeline_mode<synchronous>, transform_indices = @transform_2, window_bounds = array<i64: 1, 128>}, {pipeline_mode = #tpu.pipeline_mode<synchronous>, transform_indices = @transform_3, window_bounds = array<i64: 128, 128>}, {pipeline_mode = #tpu.pipeline_mode<synchronous>, transform_indices = @transform_4, window_bounds = array<i64: 1, 128>}, {pipeline_mode = #tpu.pipeline_mode<synchronous>, transform_indices = @transform_5, window_bounds = array<i64: 128, 128>}, {pipeline_mode = #tpu.pipeline_mode<synchronous>, transform_indices = @transform_6, window_bounds = array<i64: 1, 128>}, {pipeline_mode = #tpu.pipeline_mode<synchronous>, transform_indices = @transform_7, window_bounds = array<i64: 16, 4>}, {pipeline_mode = #tpu.pipeline_mode<synchronous>, transform_indices = @transform_8, window_bounds = array<i64: 16, 128>}]} {
    %c0 = arith.constant 0 : index
    %c0_0 = arith.constant 0 : index
    %0 = vector.load %arg1[%c0, %c0_0] : memref<16x896xbf16, #tpu.memory_space<vmem>>, vector<16x896xbf16>
    %c0_1 = arith.constant 0 : index
    %c0_2 = arith.constant 0 : index
    %1 = vector.load %arg2[%c0_1, %c0_2] : memref<896x128xbf16, #tpu.memory_space<vmem>>, vector<896x128xbf16>
    %cst = arith.constant dense<0.000000e+00> : vector<16x128xf32>
    %2 = tpu.matmul %0, %1, %cst {dimension_numbers = #tpu.dot_dimension_numbers<[1], [0], [0], [1], [0, 0, 1, 1], [], []>} : vector<16x896xbf16>, vector<896x128xbf16>, vector<16x128xf32> -> vector<16x128xf32>
    %c0_3 = arith.constant 0 : index
    %c0_4 = arith.constant 0 : index
    %3 = vector.load %arg3[%c0_3, %c0_4] : memref<1x128xf32, #tpu.memory_space<vmem>>, vector<1x128xf32>
    %4 = vector.broadcast %3 : vector<1x128xf32> to vector<16x128xf32>
    %5 = arith.addf %2, %4 : vector<16x128xf32>
    %cst_5 = arith.constant 0.000000e+00 : f32
    %6 = vector.broadcast %cst_5 : f32 to vector<16x128xf32>
    %7 = arith.maximumf %5, %6 : vector<16x128xf32>
    %8 = arith.truncf %7 : vector<16x128xf32> to vector<16x128xbf16>
    %c0_6 = arith.constant 0 : index
    %c0_7 = arith.constant 0 : index
    %9 = vector.load %arg4[%c0_6, %c0_7] : memref<128x128xbf16, #tpu.memory_space<vmem>>, vector<128x128xbf16>
    %cst_8 = arith.constant dense<0.000000e+00> : vector<16x128xf32>
    %10 = tpu.matmul %8, %9, %cst_8 {dimension_numbers = #tpu.dot_dimension_numbers<[1], [0], [0], [1], [0, 0, 1, 1], [], []>} : vector<16x128xbf16>, vector<128x128xbf16>, vector<16x128xf32> -> vector<16x128xf32>
    %c0_9 = arith.constant 0 : index
    %c0_10 = arith.constant 0 : index
    %11 = vector.load %arg5[%c0_9, %c0_10] : memref<1x128xf32, #tpu.memory_space<vmem>>, vector<1x128xf32>
    %12 = vector.broadcast %11 : vector<1x128xf32> to vector<16x128xf32>
    %13 = arith.addf %10, %12 : vector<16x128xf32>
    %cst_11 = arith.constant 0.000000e+00 : f32
    %14 = vector.broadcast %cst_11 : f32 to vector<16x128xf32>
    %15 = arith.maximumf %13, %14 : vector<16x128xf32>
    %16 = arith.truncf %15 : vector<16x128xf32> to vector<16x128xbf16>
    %c0_12 = arith.constant 0 : index
    %c0_13 = arith.constant 0 : index
    %17 = vector.load %arg6[%c0_12, %c0_13] : memref<128x128xbf16, #tpu.memory_space<vmem>>, vector<128x128xbf16>
    %cst_14 = arith.constant dense<0.000000e+00> : vector<16x128xf32>
    %18 = tpu.matmul %16, %17, %cst_14 {dimension_numbers = #tpu.dot_dimension_numbers<[1], [0], [0], [1], [0, 0, 1, 1], [], []>} : vector<16x128xbf16>, vector<128x128xbf16>, vector<16x128xf32> -> vector<16x128xf32>
    %c0_15 = arith.constant 0 : index
    %c0_16 = arith.constant 0 : index
    %19 = vector.load %arg7[%c0_15, %c0_16] : memref<1x128xf32, #tpu.memory_space<vmem>>, vector<1x128xf32>
    %20 = vector.broadcast %19 : vector<1x128xf32> to vector<16x128xf32>
    %21 = arith.addf %18, %20 : vector<16x128xf32>
    %22 = tpu.iota {dimensions = array<i32: 1>} : vector<16x128xi32>
    %c4_i32 = arith.constant 4 : i32
    %23 = vector.broadcast %c4_i32 : i32 to vector<16x128xi32>
    %24 = arith.cmpi slt, %22, %23 : vector<16x128xi32>
    %cst_17 = arith.constant -1.000000e+30 : f32
    %25 = vector.broadcast %cst_17 : f32 to vector<16x128xf32>
    %26 = arith.select %24, %21, %25 : vector<16x128xi1>, vector<16x128xf32>
    %cst_18 = arith.constant dense<0xFF800000> : vector<16xf32>
    %27 = vector.multi_reduction <maximumf>, %26, %cst_18 [1] : vector<16x128xf32> to vector<16xf32>
    %28 = vector.shape_cast %27 : vector<16xf32> to vector<16x1xf32>
    %29 = vector.broadcast %28 : vector<16x1xf32> to vector<16x128xf32>
    %30 = arith.subf %26, %29 : vector<16x128xf32>
    %31 = math.exp %30 : vector<16x128xf32>
    %cst_19 = arith.constant dense<0.000000e+00> : vector<16xf32>
    %32 = vector.multi_reduction <add>, %31, %cst_19 [1] : vector<16x128xf32> to vector<16xf32>
    %33 = vector.shape_cast %32 : vector<16xf32> to vector<16x1xf32>
    %34 = tpu.reciprocal %33 {approx = true} : vector<16x1xf32> -> vector<16x1xf32>
    %35 = vector.extract_strided_slice %31 {offsets = [0, 0], sizes = [16, 4], strides = [1, 1]} : vector<16x128xf32> to vector<16x4xf32>
    %36 = vector.broadcast %34 : vector<16x1xf32> to vector<16x4xf32>
    %37 = arith.mulf %35, %36 : vector<16x4xf32>
    %c0_20 = arith.constant 0 : index
    %c0_21 = arith.constant 0 : index
    %38 = vector.load %arg8[%c0_20, %c0_21] : memref<16x4xf32, #tpu.memory_space<vmem>>, vector<16x4xf32>
    %39 = vector.extract_strided_slice %38 {offsets = [0, 2], sizes = [16, 1], strides = [1, 1]} : vector<16x4xf32> to vector<16x1xf32>
    %40 = vector.extract_strided_slice %38 {offsets = [0, 0], sizes = [16, 1], strides = [1, 1]} : vector<16x4xf32> to vector<16x1xf32>
    %41 = arith.subf %39, %40 : vector<16x1xf32>
    %42 = vector.shape_cast %41 : vector<16x1xf32> to vector<16x1xf32>
    %43 = vector.broadcast %42 : vector<16x1xf32> to vector<16x4xf32>
    %44 = vector.extract_strided_slice %38 {offsets = [0, 3], sizes = [16, 1], strides = [1, 1]} : vector<16x4xf32> to vector<16x1xf32>
    %45 = vector.extract_strided_slice %38 {offsets = [0, 1], sizes = [16, 1], strides = [1, 1]} : vector<16x4xf32> to vector<16x1xf32>
    %46 = arith.subf %44, %45 : vector<16x1xf32>
    %47 = vector.shape_cast %46 : vector<16x1xf32> to vector<16x1xf32>
    %48 = vector.broadcast %47 : vector<16x1xf32> to vector<16x4xf32>
    %49 = vector.extract_strided_slice %38 {offsets = [0, 0], sizes = [16, 1], strides = [1, 1]} : vector<16x4xf32> to vector<16x1xf32>
    %50 = vector.shape_cast %49 : vector<16x1xf32> to vector<16x1xf32>
    %51 = vector.broadcast %50 : vector<16x1xf32> to vector<16x4xf32>
    %cst_22 = arith.constant 5.000000e-01 : f32
    %52 = vector.broadcast %cst_22 : f32 to vector<16x4xf32>
    %53 = arith.mulf %52, %43 : vector<16x4xf32>
    %54 = arith.addf %51, %53 : vector<16x4xf32>
    %55 = vector.extract_strided_slice %38 {offsets = [0, 1], sizes = [16, 1], strides = [1, 1]} : vector<16x4xf32> to vector<16x1xf32>
    %56 = vector.shape_cast %55 : vector<16x1xf32> to vector<16x1xf32>
    %57 = vector.broadcast %56 : vector<16x1xf32> to vector<16x4xf32>
    %cst_23 = arith.constant 5.000000e-01 : f32
    %58 = vector.broadcast %cst_23 : f32 to vector<16x4xf32>
    %59 = arith.mulf %58, %48 : vector<16x4xf32>
    %60 = arith.addf %57, %59 : vector<16x4xf32>
    %61 = vector.extract_strided_slice %21 {offsets = [0, 4], sizes = [16, 4], strides = [1, 1]} : vector<16x128xf32> to vector<16x4xf32>
    %cst_24 = arith.constant 1.000000e-01 : f32
    %62 = vector.broadcast %cst_24 : f32 to vector<16x4xf32>
    %63 = arith.mulf %61, %62 : vector<16x4xf32>
    %64 = vector.extract_strided_slice %21 {offsets = [0, 8], sizes = [16, 4], strides = [1, 1]} : vector<16x128xf32> to vector<16x4xf32>
    %cst_25 = arith.constant 1.000000e-01 : f32
    %65 = vector.broadcast %cst_25 : f32 to vector<16x4xf32>
    %66 = arith.mulf %64, %65 : vector<16x4xf32>
    %67 = vector.extract_strided_slice %21 {offsets = [0, 12], sizes = [16, 4], strides = [1, 1]} : vector<16x128xf32> to vector<16x4xf32>
    %cst_26 = arith.constant 2.000000e-01 : f32
    %68 = vector.broadcast %cst_26 : f32 to vector<16x4xf32>
    %69 = arith.mulf %67, %68 : vector<16x4xf32>
    %cst_27 = arith.constant 4.13516665 : f32
    %70 = vector.broadcast %cst_27 : f32 to vector<16x4xf32>
    %71 = arith.minimumf %69, %70 : vector<16x4xf32>
    %72 = vector.extract_strided_slice %21 {offsets = [0, 16], sizes = [16, 4], strides = [1, 1]} : vector<16x128xf32> to vector<16x4xf32>
    %cst_28 = arith.constant 2.000000e-01 : f32
    %73 = vector.broadcast %cst_28 : f32 to vector<16x4xf32>
    %74 = arith.mulf %72, %73 : vector<16x4xf32>
    %cst_29 = arith.constant 4.13516665 : f32
    %75 = vector.broadcast %cst_29 : f32 to vector<16x4xf32>
    %76 = arith.minimumf %74, %75 : vector<16x4xf32>
    %77 = arith.mulf %63, %43 : vector<16x4xf32>
    %78 = arith.addf %77, %54 : vector<16x4xf32>
    %79 = arith.mulf %66, %48 : vector<16x4xf32>
    %80 = arith.addf %79, %60 : vector<16x4xf32>
    %81 = math.exp %71 : vector<16x4xf32>
    %82 = arith.mulf %81, %43 : vector<16x4xf32>
    %83 = math.exp %76 : vector<16x4xf32>
    %84 = arith.mulf %83, %48 : vector<16x4xf32>
    %cst_30 = arith.constant 5.000000e-01 : f32
    %85 = vector.broadcast %cst_30 : f32 to vector<16x4xf32>
    %86 = arith.mulf %85, %82 : vector<16x4xf32>
    %87 = arith.subf %78, %86 : vector<16x4xf32>
    %cst_31 = arith.constant 0.000000e+00 : f32
    %cst_32 = arith.constant 1.600000e+01 : f32
    %88 = vector.broadcast %cst_31 : f32 to vector<16x4xf32>
    %89 = arith.maximumf %88, %87 : vector<16x4xf32>
    %90 = vector.broadcast %cst_32 : f32 to vector<16x4xf32>
    %91 = arith.minimumf %90, %89 : vector<16x4xf32>
    %cst_33 = arith.constant 5.000000e-01 : f32
    %92 = vector.broadcast %cst_33 : f32 to vector<16x4xf32>
    %93 = arith.mulf %92, %82 : vector<16x4xf32>
    %94 = arith.addf %78, %93 : vector<16x4xf32>
    %cst_34 = arith.constant 0.000000e+00 : f32
    %cst_35 = arith.constant 1.600000e+01 : f32
    %95 = vector.broadcast %cst_34 : f32 to vector<16x4xf32>
    %96 = arith.maximumf %95, %94 : vector<16x4xf32>
    %97 = vector.broadcast %cst_35 : f32 to vector<16x4xf32>
    %98 = arith.minimumf %97, %96 : vector<16x4xf32>
    %cst_36 = arith.constant 5.000000e-01 : f32
    %99 = vector.broadcast %cst_36 : f32 to vector<16x4xf32>
    %100 = arith.mulf %99, %84 : vector<16x4xf32>
    %101 = arith.subf %80, %100 : vector<16x4xf32>
    %cst_37 = arith.constant 0.000000e+00 : f32
    %cst_38 = arith.constant 1.600000e+01 : f32
    %102 = vector.broadcast %cst_37 : f32 to vector<16x4xf32>
    %103 = arith.maximumf %102, %101 : vector<16x4xf32>
    %104 = vector.broadcast %cst_38 : f32 to vector<16x4xf32>
    %105 = arith.minimumf %104, %103 : vector<16x4xf32>
    %cst_39 = arith.constant 5.000000e-01 : f32
    %106 = vector.broadcast %cst_39 : f32 to vector<16x4xf32>
    %107 = arith.mulf %106, %84 : vector<16x4xf32>
    %108 = arith.addf %80, %107 : vector<16x4xf32>
    %cst_40 = arith.constant 0.000000e+00 : f32
    %cst_41 = arith.constant 1.600000e+01 : f32
    %109 = vector.broadcast %cst_40 : f32 to vector<16x4xf32>
    %110 = arith.maximumf %109, %108 : vector<16x4xf32>
    %111 = vector.broadcast %cst_41 : f32 to vector<16x4xf32>
    %112 = arith.minimumf %111, %110 : vector<16x4xf32>
    %113 = arith.subf %98, %91 : vector<16x4xf32>
    %cst_42 = arith.constant 1.000000e+00 : f32
    %114 = vector.broadcast %cst_42 : f32 to vector<16x4xf32>
    %115 = arith.cmpf oge, %113, %114 : vector<16x4xf32>
    %116 = arith.subf %112, %105 : vector<16x4xf32>
    %cst_43 = arith.constant 1.000000e+00 : f32
    %117 = vector.broadcast %cst_43 : f32 to vector<16x4xf32>
    %118 = arith.cmpf oge, %116, %117 : vector<16x4xf32>
    %119 = arith.andi %115, %118 : vector<16x4xi1>
    %120 = arith.extui %119 : vector<16x4xi1> to vector<16x4xi32>
    %121 = arith.sitofp %120 : vector<16x4xi32> to vector<16x4xf32>
    %cst_44 = arith.constant 0.000000e+00 : f32
    %122 = vector.broadcast %cst_44 : f32 to vector<16x104xf32>
    %123 = tpu.concatenate %37, %91, %105, %98, %112, %121, %122 in 1 : vector<16x4xf32>, vector<16x4xf32>, vector<16x4xf32>, vector<16x4xf32>, vector<16x4xf32>, vector<16x4xf32>, vector<16x104xf32> -> vector<16x128xf32>
    %c0_45 = arith.constant 0 : index
    %c0_46 = arith.constant 0 : index
    %124 = vector.load %arg9[%c0_45, %c0_46] : memref<16x128xf32, #tpu.memory_space<vmem>>, vector<16x128xf32>
    tpu.vector_store %arg9[%c0_45, %c0_46], %123 {strides = array<i32>} : memref<16x128xf32, #tpu.memory_space<vmem>>, vector<16x128xf32>,
    return
  }
  func.func @transform_0(%arg0: i32) -> (i32, i32) {
    %c0_i32 = arith.constant 0 : i32
    %c0_i32_0 = arith.constant 0 : i32
    %c0_i32_1 = arith.constant 0 : i32
    return %c0_i32, %c0_i32_0 : i32, i32
  }
  func.func @transform_1(%arg0: i32) -> (i32, i32) {
    %c0_i32 = arith.constant 0 : i32
    %c0_i32_0 = arith.constant 0 : i32
    %c0_i32_1 = arith.constant 0 : i32
    return %c0_i32, %c0_i32_0 : i32, i32
  }
  func.func @transform_2(%arg0: i32) -> (i32, i32) {
    %c0_i32 = arith.constant 0 : i32
    %c0_i32_0 = arith.constant 0 : i32
    %c0_i32_1 = arith.constant 0 : i32
    return %c0_i32, %c0_i32_0 : i32, i32
  }
  func.func @transform_3(%arg0: i32) -> (i32, i32) {
    %c0_i32 = arith.constant 0 : i32
    %c0_i32_0 = arith.constant 0 : i32
    %c0_i32_1 = arith.constant 0 : i32
    return %c0_i32, %c0_i32_0 : i32, i32
  }
  func.func @transform_4(%arg0: i32) -> (i32, i32) {
    %c0_i32 = arith.constant 0 : i32
    %c0_i32_0 = arith.constant 0 : i32
    %c0_i32_1 = arith.constant 0 : i32
    return %c0_i32, %c0_i32_0 : i32, i32
  }
  func.func @transform_5(%arg0: i32) -> (i32, i32) {
    %c0_i32 = arith.constant 0 : i32
    %c0_i32_0 = arith.constant 0 : i32
    %c0_i32_1 = arith.constant 0 : i32
    return %c0_i32, %c0_i32_0 : i32, i32
  }
  func.func @transform_6(%arg0: i32) -> (i32, i32) {
    %c0_i32 = arith.constant 0 : i32
    %c0_i32_0 = arith.constant 0 : i32
    %c0_i32_1 = arith.constant 0 : i32
    return %c0_i32, %c0_i32_0 : i32, i32
  }
  func.func @transform_7(%arg0: i32) -> (i32, i32) {
    %c0_i32 = arith.constant 0 : i32
    %c0_i32_0 = arith.constant 0 : i32
    %c0_i32_1 = arith.constant 0 : i32
    return %c0_i32, %c0_i32_0 : i32, i32
  }
  func.func @transform_8(%arg0: i32) -> (i32, i32) {
    %c0_i32 = arith.constant 0 : i32
    %c0_i32_0 = arith.constant 0 : i32
    %c0_i32_1 = arith.constant 0 : i32
    return %c0_i32, %c0_i32_0 : i32, i32
  }
}

</mosaic_0001>

<llo_original>
// kernel: roi_heads_forward.1
$region0: #{roi_heads_forward.1}
  #allocation0 [shape = 'u32[]', space=smem, size = 0x4, offset = 0x4, fixed_abs, tag = 'smem constant byte address 0x4 - core index']
  #allocation1 [shape = 'u32[144,128]{1,0:T(1,128)}', space=vmem, size = 0x12000, scoped, tag = 'internal scratch']
  %s0 = inlined_call_operand.vmem [shape: bf16[16,896], index: 0, kind: input, shape index: {}]
  %s1 = inlined_call_operand.vmem [shape: bf16[896,128], index: 1, kind: input, shape index: {}]
  %s2 = inlined_call_operand.vmem [shape: f32[1,128], index: 2, kind: input, shape index: {}]
  %s3 = inlined_call_operand.vmem [shape: bf16[128,128], index: 3, kind: input, shape index: {}]
  %s4 = inlined_call_operand.vmem [shape: f32[1,128], index: 4, kind: input, shape index: {}]
  %s5 = inlined_call_operand.vmem [shape: bf16[128,128], index: 5, kind: input, shape index: {}]
  %s6 = inlined_call_operand.vmem [shape: f32[1,128], index: 6, kind: input, shape index: {}]
  %s7 = inlined_call_operand.vmem [shape: f32[16,4], index: 7, kind: input, shape index: {}]
  %s8 = inlined_call_operand.vmem [shape: f32[16,128], index: 8, kind: output, shape index: {}]
  %s9 = sld [smem:[#allocation0]]
  $region42: #{roi_heads_forward.1} parent=0
    _
  %s11 = ssub.s32 1, %s9
  %s12 = scalar_select 0, %s11, %s9
  // Predicated region
  $region2: #{roi_heads_forward.1} parent=0 // pred_check
    _
  $region3: #{roi_heads_forward.1} parent=0 // pred_check_branch
    %14 = sbr.rel (0) target = $region5
  $region4: #{roi_heads_forward.1} parent=0 // pred_region
    _
  $region5: #{roi_heads_forward.1} parent=0 // pred_fallthru
    _
  // Predicated region
  $region6: #{roi_heads_forward.1} parent=0 // pred_check
    _
  $region7: #{roi_heads_forward.1} parent=0 // pred_check_branch
    %16 = sbr.rel (0) target = $region9
  $region8: #{roi_heads_forward.1} parent=0 // pred_region
    _
  $region9: #{roi_heads_forward.1} parent=0 // pred_fallthru
    _
  // Predicated region
  $region10: #{roi_heads_forward.1} parent=0 // pred_check
    _
  $region11: #{roi_heads_forward.1} parent=0 // pred_check_branch
    %18 = sbr.rel (0) target = $region13
  $region12: #{roi_heads_forward.1} parent=0 // pred_region
    _
  $region13: #{roi_heads_forward.1} parent=0 // pred_fallthru
    _
  // Predicated region
  $region14: #{roi_heads_forward.1} parent=0 // pred_check
    _
  $region15: #{roi_heads_forward.1} parent=0 // pred_check_branch
    %20 = sbr.rel (0) target = $region17
  $region16: #{roi_heads_forward.1} parent=0 // pred_region
    _
  $region17: #{roi_heads_forward.1} parent=0 // pred_fallthru
    _
  // Predicated region
  $region18: #{roi_heads_forward.1} parent=0 // pred_check
    _
  $region19: #{roi_heads_forward.1} parent=0 // pred_check_branch
    %22 = sbr.rel (0) target = $region21
  $region20: #{roi_heads_forward.1} parent=0 // pred_region
    _
  $region21: #{roi_heads_forward.1} parent=0 // pred_fallthru
    _
  // Predicated region
  $region22: #{roi_heads_forward.1} parent=0 // pred_check
    _
  $region23: #{roi_heads_forward.1} parent=0 // pred_check_branch
    %24 = sbr.rel (0) target = $region25
  $region24: #{roi_heads_forward.1} parent=0 // pred_region
    _
  $region25: #{roi_heads_forward.1} parent=0 // pred_fallthru
    _
  // Predicated region
  $region26: #{roi_heads_forward.1} parent=0 // pred_check
    _
  $region27: #{roi_heads_forward.1} parent=0 // pred_check_branch
    %26 = sbr.rel (0) target = $region29
  $region28: #{roi_heads_forward.1} parent=0 // pred_region
    _
  $region29: #{roi_heads_forward.1} parent=0 // pred_fallthru
    _
  // Predicated region
  $region30: #{roi_heads_forward.1} parent=0 // pred_check
    _
  $region31: #{roi_heads_forward.1} parent=0 // pred_check_branch
    %28 = sbr.rel (0) target = $region33
  $region32: #{roi_heads_forward.1} parent=0 // pred_region
    _
  $region33: #{roi_heads_forward.1} parent=0 // pred_fallthru
    _
  %v30 = vld [vmem:[%s0] sm:$0xff]
  %v31 = vld [vmem:[%s0 + $0x8] sm:$0xff]
  %v32 = vld [vmem:[%s0 + $0x10] sm:$0xff]
  %v33 = vld [vmem:[%s0 + $0x18] sm:$0xf]
  %v34 = vld [vmem:[%s0 + $0x1c] sm:$0xff]
  %v35 = vld [vmem:[%s0 + $0x24] sm:$0xff]
  %v36 = vld [vmem:[%s0 + $0x2c] sm:$0xff]
  %v37 = vld [vmem:[%s0 + $0x34] sm:$0xf]
  %v38 = vld [vmem:[%s1] sm:$0xf]
  %v39 = vld [vmem:[%s1 + $0x4] sm:$0xf]
  %v40 = vld [vmem:[%s1 + $0x8] sm:$0xf]
  %v41 = vld [vmem:[%s1 + $0xc] sm:$0xf]
  %v42 = vld [vmem:[%s1 + $0x10] sm:$0xf]
  %v43 = vld [vmem:[%s1 + $0x14] sm:$0xf]
  %v44 = vld [vmem:[%s1 + $0x18] sm:$0xf]
  %v45 = vld [vmem:[%s1 + $0x1c] sm:$0xf]
  %v46 = vld [vmem:[%s1 + $0x20] sm:$0xf]
  %v47 = vld [vmem:[%s1 + $0x24] sm:$0xf]
  %v48 = vld [vmem:[%s1 + $0x28] sm:$0xf]
  %v49 = vld [vmem:[%s1 + $0x2c] sm:$0xf]
  %v50 = vld [vmem:[%s1 + $0x30] sm:$0xf]
  %v51 = vld [vmem:[%s1 + $0x34] sm:$0xf]
  %v52 = vld [vmem:[%s1 + $0x38] sm:$0xf]
  %v53 = vld [vmem:[%s1 + $0x3c] sm:$0xf]
  %v54 = vld [vmem:[%s1 + $0x40] sm:$0xf]
  %v55 = vld [vmem:[%s1 + $0x44] sm:$0xf]
  %v56 = vld [vmem:[%s1 + $0x48] sm:$0xf]
  %v57 = vld [vmem:[%s1 + $0x4c] sm:$0xf]
  %v58 = vld [vmem:[%s1 + $0x50] sm:$0xf]
  %v59 = vld [vmem:[%s1 + $0x54] sm:$0xf]
  %v60 = vld [vmem:[%s1 + $0x58] sm:$0xf]
  %v61 = vld [vmem:[%s1 + $0x5c] sm:$0xf]
  %v62 = vld [vmem:[%s1 + $0x60] sm:$0xf]
  %v63 = vld [vmem:[%s1 + $0x64] sm:$0xf]
  %v64 = vld [vmem:[%s1 + $0x68] sm:$0xf]
  %v65 = vld [vmem:[%s1 + $0x6c] sm:$0xf]
  %v66 = vld [vmem:[%s1 + $0x70] sm:$0xf]
  %v67 = vld [vmem:[%s1 + $0x74] sm:$0xf]
  %v68 = vld [vmem:[%s1 + $0x78] sm:$0xf]
  %v69 = vld [vmem:[%s1 + $0x7c] sm:$0xf]
  %v70 = vld [vmem:[%s1 + $0x80] sm:$0xf]
  %v71 = vld [vmem:[%s1 + $0x84] sm:$0xf]
  %v72 = vld [vmem:[%s1 + $0x88] sm:$0xf]
  %v73 = vld [vmem:[%s1 + $0x8c] sm:$0xf]
  %v74 = vld [vmem:[%s1 + $0x90] sm:$0xf]
  %v75 = vld [vmem:[%s1 + $0x94] sm:$0xf]
  %v76 = vld [vmem:[%s1 + $0x98] sm:$0xf]
  %v77 = vld [vmem:[%s1 + $0x9c] sm:$0xf]
  %v78 = vld [vmem:[%s1 + $0xa0] sm:$0xf]
  %v79 = vld [vmem:[%s1 + $0xa4] sm:$0xf]
  %v80 = vld [vmem:[%s1 + $0xa8] sm:$0xf]
  %v81 = vld [vmem:[%s1 + $0xac] sm:$0xf]
  %v82 = vld [vmem:[%s1 + $0xb0] sm:$0xf]
  %v83 = vld [vmem:[%s1 + $0xb4] sm:$0xf]
  %v84 = vld [vmem:[%s1 + $0xb8] sm:$0xf]
  %v85 = vld [vmem:[%s1 + $0xbc] sm:$0xf]
  %v86 = vld [vmem:[%s1 + $0xc0] sm:$0xf]
  %v87 = vld [vmem:[%s1 + $0xc4] sm:$0xf]
  %v88 = vld [vmem:[%s1 + $0xc8] sm:$0xf]
  %v89 = vld [vmem:[%s1 + $0xcc] sm:$0xf]
  %v90 = vld [vmem:[%s1 + $0xd0] sm:$0xf]
  %v91 = vld [vmem:[%s1 + $0xd4] sm:$0xf]
  %v92 = vld [vmem:[%s1 + $0xd8] sm:$0xf]
  %v93 = vld [vmem:[%s1 + $0xdc] sm:$0xf]
  %v94 = vld [vmem:[%s1 + $0xe0] sm:$0xf]
  %v95 = vld [vmem:[%s1 + $0xe4] sm:$0xf]
  %v96 = vld [vmem:[%s1 + $0xe8] sm:$0xf]
  %v97 = vld [vmem:[%s1 + $0xec] sm:$0xf]
  %v98 = vld [vmem:[%s1 + $0xf0] sm:$0xf]
  %v99 = vld [vmem:[%s1 + $0xf4] sm:$0xf]
  %v100 = vld [vmem:[%s1 + $0xf8] sm:$0xf]
  %v101 = vld [vmem:[%s1 + $0xfc] sm:$0xf]
  %v102 = vld [vmem:[%s1 + $0x100] sm:$0xf]
  %v103 = vld [vmem:[%s1 + $0x104] sm:$0xf]
  %v104 = vld [vmem:[%s1 + $0x108] sm:$0xf]
  %v105 = vld [vmem:[%s1 + $0x10c] sm:$0xf]
  %v106 = vld [vmem:[%s1 + $0x110] sm:$0xf]
  %v107 = vld [vmem:[%s1 + $0x114] sm:$0xf]
  %v108 = vld [vmem:[%s1 + $0x118] sm:$0xf]
  %v109 = vld [vmem:[%s1 + $0x11c] sm:$0xf]
  %v110 = vld [vmem:[%s1 + $0x120] sm:$0xf]
  %v111 = vld [vmem:[%s1 + $0x124] sm:$0xf]
  %v112 = vld [vmem:[%s1 + $0x128] sm:$0xf]
  %v113 = vld [vmem:[%s1 + $0x12c] sm:$0xf]
  %v114 = vld [vmem:[%s1 + $0x130] sm:$0xf]
  %v115 = vld [vmem:[%s1 + $0x134] sm:$0xf]
  %v116 = vld [vmem:[%s1 + $0x138] sm:$0xf]
  %v117 = vld [vmem:[%s1 + $0x13c] sm:$0xf]
  %v118 = vld [vmem:[%s1 + $0x140] sm:$0xf]
  %v119 = vld [vmem:[%s1 + $0x144] sm:$0xf]
  %v120 = vld [vmem:[%s1 + $0x148] sm:$0xf]
  %v121 = vld [vmem:[%s1 + $0x14c] sm:$0xf]
  %v122 = vld [vmem:[%s1 + $0x150] sm:$0xf]
  %v123 = vld [vmem:[%s1 + $0x154] sm:$0xf]
  %v124 = vld [vmem:[%s1 + $0x158] sm:$0xf]
  %v125 = vld [vmem:[%s1 + $0x15c] sm:$0xf]
  %v126 = vld [vmem:[%s1 + $0x160] sm:$0xf]
  %v127 = vld [vmem:[%s1 + $0x164] sm:$0xf]
  %v128 = vld [vmem:[%s1 + $0x168] sm:$0xf]
  %v129 = vld [vmem:[%s1 + $0x16c] sm:$0xf]
  %v130 = vld [vmem:[%s1 + $0x170] sm:$0xf]
  %v131 = vld [vmem:[%s1 + $0x174] sm:$0xf]
  %v132 = vld [vmem:[%s1 + $0x178] sm:$0xf]
  %v133 = vld [vmem:[%s1 + $0x17c] sm:$0xf]
  %v134 = vld [vmem:[%s1 + $0x180] sm:$0xf]
  %v135 = vld [vmem:[%s1 + $0x184] sm:$0xf]
  %v136 = vld [vmem:[%s1 + $0x188] sm:$0xf]
  %v137 = vld [vmem:[%s1 + $0x18c] sm:$0xf]
  %v138 = vld [vmem:[%s1 + $0x190] sm:$0xf]
  %v139 = vld [vmem:[%s1 + $0x194] sm:$0xf]
  %v140 = vld [vmem:[%s1 + $0x198] sm:$0xf]
  %v141 = vld [vmem:[%s1 + $0x19c] sm:$0xf]
  %v142 = vld [vmem:[%s1 + $0x1a0] sm:$0xf]
  %v143 = vld [vmem:[%s1 + $0x1a4] sm:$0xf]
  %v144 = vld [vmem:[%s1 + $0x1a8] sm:$0xf]
  %v145 = vld [vmem:[%s1 + $0x1ac] sm:$0xf]
  %v146 = vld [vmem:[%s1 + $0x1b0] sm:$0xf]
  %v147 = vld [vmem:[%s1 + $0x1b4] sm:$0xf]
  %v148 = vld [vmem:[%s1 + $0x1b8] sm:$0xf]
  %v149 = vld [vmem:[%s1 + $0x1bc] sm:$0xf]
  %v150 = vld [vmem:[%s2] sm:$0x1]
  %v152 = vlaneseq
  %v153 = vshrl.u32 %v152, 7
  %v154 = vsub.s32 0, %v153
  %v155 = vrot.slane %v150, %v154
  %v165 = vunpack.c.l.b16 %v30
  %v166 = vunpack.c.h.b16 %v30
  %v167 = vunpack.c.l.b16 %v31
  %v168 = vunpack.c.h.b16 %v31
  %v169 = vunpack.c.l.b16 %v32
  %v170 = vunpack.c.h.b16 %v32
  %v171 = vunpack.c.l.b16 %v33
  %v172 = vunpack.c.l.b16 %v34
  %v173 = vunpack.c.h.b16 %v34
  %v174 = vunpack.c.l.b16 %v35
  %v175 = vunpack.c.h.b16 %v35
  %v176 = vunpack.c.l.b16 %v36
  %v177 = vunpack.c.h.b16 %v36
  %v178 = vunpack.c.l.b16 %v37
  %v179 = vpack.c.b16 %v172, %v165
  %v180 = vpack.c.b16 %v173, %v166
  %v181 = vpack.c.b16 %v174, %v167
  %v182 = vpack.c.b16 %v175, %v168
  %v183 = vpack.c.b16 %v176, %v169
  %v184 = vpack.c.b16 %v177, %v170
  %v185 = vpack.c.b16 %v178, %v171
  %v305 = vunpack.c.l.b16 %v38
  %v306 = vunpack.c.l.b16 %v39
  %v307 = vunpack.c.l.b16 %v40
  %v308 = vunpack.c.l.b16 %v41
  %v309 = vunpack.c.l.b16 %v42
  %v310 = vunpack.c.l.b16 %v43
  %v311 = vunpack.c.l.b16 %v44
  %v312 = vunpack.c.l.b16 %v45
  %v313 = vunpack.c.l.b16 %v46
  %v314 = vunpack.c.l.b16 %v47
  %v315 = vunpack.c.l.b16 %v48
  %v316 = vunpack.c.l.b16 %v49
  %v317 = vunpack.c.l.b16 %v50
  %v318 = vunpack.c.l.b16 %v51
  %v319 = vunpack.c.l.b16 %v52
  %v320 = vunpack.c.l.b16 %v53
  %v321 = vunpack.c.l.b16 %v54
  %v322 = vunpack.c.l.b16 %v55
  %v323 = vunpack.c.l.b16 %v56
  %v324 = vunpack.c.l.b16 %v57
  %v325 = vunpack.c.l.b16 %v58
  %v326 = vunpack.c.l.b16 %v59
  %v327 = vunpack.c.l.b16 %v60
  %v328 = vunpack.c.l.b16 %v61
  %v329 = vunpack.c.l.b16 %v62
  %v330 = vunpack.c.l.b16 %v63
  %v331 = vunpack.c.l.b16 %v64
  %v332 = vunpack.c.l.b16 %v65
  %v333 = vunpack.c.l.b16 %v66
  %v334 = vunpack.c.l.b16 %v67
  %v335 = vunpack.c.l.b16 %v68
  %v336 = vunpack.c.l.b16 %v69
  %v337 = vunpack.c.l.b16 %v70
  %v338 = vunpack.c.l.b16 %v71
  %v339 = vunpack.c.l.b16 %v72
  %v340 = vunpack.c.l.b16 %v73
  %v341 = vunpack.c.l.b16 %v74
  %v342 = vunpack.c.l.b16 %v75
  %v343 = vunpack.c.l.b16 %v76
  %v344 = vunpack.c.l.b16 %v77
  %v345 = vunpack.c.l.b16 %v78
  %v346 = vunpack.c.l.b16 %v79
  %v347 = vunpack.c.l.b16 %v80
  %v348 = vunpack.c.l.b16 %v81
  %v349 = vunpack.c.l.b16 %v82
  %v350 = vunpack.c.l.b16 %v83
  %v351 = vunpack.c.l.b16 %v84
  %v352 = vunpack.c.l.b16 %v85
  %v353 = vunpack.c.l.b16 %v86
  %v354 = vunpack.c.l.b16 %v87
  %v355 = vunpack.c.l.b16 %v88
  %v356 = vunpack.c.l.b16 %v89
  %v357 = vunpack.c.l.b16 %v90
  %v358 = vunpack.c.l.b16 %v91
  %v359 = vunpack.c.l.b16 %v92
  %v360 = vunpack.c.l.b16 %v93
  %v361 = vunpack.c.l.b16 %v94
  %v362 = vunpack.c.l.b16 %v95
  %v363 = vunpack.c.l.b16 %v96
  %v364 = vunpack.c.l.b16 %v97
  %v365 = vunpack.c.l.b16 %v98
  %v366 = vunpack.c.l.b16 %v99
  %v367 = vunpack.c.l.b16 %v100
  %v368 = vunpack.c.l.b16 %v101
  %v369 = vunpack.c.l.b16 %v102
  %v370 = vunpack.c.l.b16 %v103
  %v371 = vunpack.c.l.b16 %v104
  %v372 = vunpack.c.l.b16 %v105
  %v373 = vunpack.c.l.b16 %v106
  %v374 = vunpack.c.l.b16 %v107
  %v375 = vunpack.c.l.b16 %v108
  %v376 = vunpack.c.l.b16 %v109
  %v377 = vunpack.c.l.b16 %v110
  %v378 = vunpack.c.l.b16 %v111
  %v379 = vunpack.c.l.b16 %v112
  %v380 = vunpack.c.l.b16 %v113
  %v381 = vunpack.c.l.b16 %v114
  %v382 = vunpack.c.l.b16 %v115
  %v383 = vunpack.c.l.b16 %v116
  %v384 = vunpack.c.l.b16 %v117
  %v385 = vunpack.c.l.b16 %v118
  %v386 = vunpack.c.l.b16 %v119
  %v387 = vunpack.c.l.b16 %v120
  %v388 = vunpack.c.l.b16 %v121
  %v389 = vunpack.c.l.b16 %v122
  %v390 = vunpack.c.l.b16 %v123
  %v391 = vunpack.c.l.b16 %v124
  %v392 = vunpack.c.l.b16 %v125
  %v393 = vunpack.c.l.b16 %v126
  %v394 = vunpack.c.l.b16 %v127
  %v395 = vunpack.c.l.b16 %v128
  %v396 = vunpack.c.l.b16 %v129
  %v397 = vunpack.c.l.b16 %v130
  %v398 = vunpack.c.l.b16 %v131
  %v399 = vunpack.c.l.b16 %v132
  %v400 = vunpack.c.l.b16 %v133
  %v401 = vunpack.c.l.b16 %v134
  %v402 = vunpack.c.l.b16 %v135
  %v403 = vunpack.c.l.b16 %v136
  %v404 = vunpack.c.l.b16 %v137
  %v405 = vunpack.c.l.b16 %v138
  %v406 = vunpack.c.l.b16 %v139
  %v407 = vunpack.c.l.b16 %v140
  %v408 = vunpack.c.l.b16 %v141
  %v409 = vunpack.c.l.b16 %v142
  %v410 = vunpack.c.l.b16 %v143
  %v411 = vunpack.c.l.b16 %v144
  %v412 = vunpack.c.l.b16 %v145
  %v413 = vunpack.c.l.b16 %v146
  %v414 = vunpack.c.l.b16 %v147
  %v415 = vunpack.c.l.b16 %v148
  %v416 = vunpack.c.l.b16 %v149
  %v417 = vpack.c.b16 %v306, %v305
  %v418 = vpack.c.b16 %v308, %v307
  %v419 = vpack.c.b16 %v310, %v309
  %v420 = vpack.c.b16 %v312, %v311
  %v421 = vpack.c.b16 %v314, %v313
  %v422 = vpack.c.b16 %v316, %v315
  %v423 = vpack.c.b16 %v318, %v317
  %v424 = vpack.c.b16 %v320, %v319
  %v425 = vpack.c.b16 %v322, %v321
  %v426 = vpack.c.b16 %v324, %v323
  %v427 = vpack.c.b16 %v326, %v325
  %v428 = vpack.c.b16 %v328, %v327
  %v429 = vpack.c.b16 %v330, %v329
  %v430 = vpack.c.b16 %v332, %v331
  %v431 = vpack.c.b16 %v334, %v333
  %v432 = vpack.c.b16 %v336, %v335
  %v433 = vpack.c.b16 %v338, %v337
  %v434 = vpack.c.b16 %v340, %v339
  %v435 = vpack.c.b16 %v342, %v341
  %v436 = vpack.c.b16 %v344, %v343
  %v437 = vpack.c.b16 %v346, %v345
  %v438 = vpack.c.b16 %v348, %v347
  %v439 = vpack.c.b16 %v350, %v349
  %v440 = vpack.c.b16 %v352, %v351
  %v441 = vpack.c.b16 %v354, %v353
  %v442 = vpack.c.b16 %v356, %v355
  %v443 = vpack.c.b16 %v358, %v357
  %v444 = vpack.c.b16 %v360, %v359
  %v445 = vpack.c.b16 %v362, %v361
  %v446 = vpack.c.b16 %v364, %v363
  %v447 = vpack.c.b16 %v366, %v365
  %v448 = vpack.c.b16 %v368, %v367
  %v449 = vpack.c.b16 %v370, %v369
  %v450 = vpack.c.b16 %v372, %v371
  %v451 = vpack.c.b16 %v374, %v373
  %v452 = vpack.c.b16 %v376, %v375
  %v453 = vpack.c.b16 %v378, %v377
  %v454 = vpack.c.b16 %v380, %v379
  %v455 = vpack.c.b16 %v382, %v381
  %v456 = vpack.c.b16 %v384, %v383
  %v457 = vpack.c.b16 %v386, %v385
  %v458 = vpack.c.b16 %v388, %v387
  %v459 = vpack.c.b16 %v390, %v389
  %v460 = vpack.c.b16 %v392, %v391
  %v461 = vpack.c.b16 %v394, %v393
  %v462 = vpack.c.b16 %v396, %v395
  %v463 = vpack.c.b16 %v398, %v397
  %v464 = vpack.c.b16 %v400, %v399
  %v465 = vpack.c.b16 %v402, %v401
  %v466 = vpack.c.b16 %v404, %v403
  %v467 = vpack.c.b16 %v406, %v405
  %v468 = vpack.c.b16 %v408, %v407
  %v469 = vpack.c.b16 %v410, %v409
  %v470 = vpack.c.b16 %v412, %v411
  %v471 = vpack.c.b16 %v414, %v413
  %v472 = vpack.c.b16 %v416, %v415
  %529 = vmatprep.subr.bf16.mxu0 0
  %530 = vmatpush1.bf16.msra.mxu0 %v424
  %531 = vmatprep.subr.bf16.mxu0 0
  %532 = vmatpush1.bf16.msra.mxu0 %v423
  %533 = vmatprep.subr.bf16.mxu0 0
  %534 = vmatpush1.bf16.msra.mxu0 %v422
  %535 = vmatprep.subr.bf16.mxu0 0
  %536 = vmatpush1.bf16.msra.mxu0 %v421
  %537 = vmatprep.subr.bf16.mxu0 0
  %538 = vmatpush1.bf16.msra.mxu0 %v420
  %539 = vmatprep.subr.bf16.mxu0 0
  %540 = vmatpush1.bf16.msra.mxu0 %v419
  %541 = vmatprep.subr.bf16.mxu0 0
  %542 = vmatpush1.bf16.msra.mxu0 %v418
  %543 = vmatprep.subr.bf16.mxu0 0
  %544 = vmatpush1.bf16.msra.mxu0 %v417
  %545 = vmatprep.subr.bf16.mxu0 0
  %546 = vmatpush2.bf16.msra.mxu0 %v432
  %547 = vmatprep.subr.bf16.mxu0 0
  %548 = vmatpush2.bf16.msra.mxu0 %v431
  %549 = vmatprep.subr.bf16.mxu0 0
  %550 = vmatpush2.bf16.msra.mxu0 %v430
  %551 = vmatprep.subr.bf16.mxu0 0
  %552 = vmatpush2.bf16.msra.mxu0 %v429
  %553 = vmatprep.subr.bf16.mxu0 0
  %554 = vmatpush2.bf16.msra.mxu0 %v428
  %555 = vmatprep.subr.bf16.mxu0 0
  %556 = vmatpush2.bf16.msra.mxu0 %v427
  %557 = vmatprep.subr.bf16.mxu0 0
  %558 = vmatpush2.bf16.msra.mxu0 %v426
  %559 = vmatprep.subr.bf16.mxu0 0
  %560 = vmatpush2.bf16.msra.mxu0 %v425
  %561 = vmatprep.mubr.bf16.mxu0 %v180
  %562 = vmatmul.mubr.bf16.gmra.mxu0 %v179
  %v563 = vpop.f32.mrf.mxu0
  %v564 = vadd.f32 %v155, %v563
  %v565 = vpop.f32.mrf.mxu0
  %v566 = vpop.f32.mrf.mxu0
  %v567 = vadd.f32 %v155, %v566
  %v568 = vpop.f32.mrf.mxu0
  %569 = vdwg.mxu0
  %570 = vmatprep.subr.bf16.mxu0 0
  %571 = vmatpush1.bf16.msra.mxu0 %v440
  %572 = vmatprep.subr.bf16.mxu0 0
  %573 = vmatpush1.bf16.msra.mxu0 %v439
  %574 = vmatprep.subr.bf16.mxu0 0
  %575 = vmatpush1.bf16.msra.mxu0 %v438
  %576 = vmatprep.subr.bf16.mxu0 0
  %577 = vmatpush1.bf16.msra.mxu0 %v437
  %578 = vmatprep.subr.bf16.mxu0 0
  %579 = vmatpush1.bf16.msra.mxu0 %v436
  %580 = vmatprep.subr.bf16.mxu0 0
  %581 = vmatpush1.bf16.msra.mxu0 %v435
  %582 = vmatprep.subr.bf16.mxu0 0
  %583 = vmatpush1.bf16.msra.mxu0 %v434
  %584 = vmatprep.subr.bf16.mxu0 0
  %585 = vmatpush1.bf16.msra.mxu0 %v433
  %586 = vmatprep.subr.bf16.mxu0 0
  %587 = vmatpush2.bf16.msra.mxu0 %v448
  %588 = vmatprep.subr.bf16.mxu0 0
  %589 = vmatpush2.bf16.msra.mxu0 %v447
  %590 = vmatprep.subr.bf16.mxu0 0
  %591 = vmatpush2.bf16.msra.mxu0 %v446
  %592 = vmatprep.subr.bf16.mxu0 0
  %593 = vmatpush2.bf16.msra.mxu0 %v445
  %594 = vmatprep.subr.bf16.mxu0 0
  %595 = vmatpush2.bf16.msra.mxu0 %v444
  %596 = vmatprep.subr.bf16.mxu0 0
  %597 = vmatpush2.bf16.msra.mxu0 %v443
  %598 = vmatprep.subr.bf16.mxu0 0
  %599 = vmatpush2.bf16.msra.mxu0 %v442
  %600 = vmatprep.subr.bf16.mxu0 0
  %601 = vmatpush2.bf16.msra.mxu0 %v441
  %602 = vmatprep.mubr.bf16.mxu0 %v182
  %603 = vmatmul.mubr.bf16.gmra.mxu0 %v181
  %v604 = vpop.f32.mrf.mxu0
  %v605 = vadd.f32 %v564, %v604
  %v606 = vpop.f32.mrf.mxu0
  %v607 = vpop.f32.mrf.mxu0
  %v608 = vadd.f32 %v567, %v607
  %v609 = vpop.f32.mrf.mxu0
  %610 = vdwg.mxu0
  %611 = vmatprep.subr.bf16.mxu0 0
  %612 = vmatpush1.bf16.msra.mxu0 %v456
  %613 = vmatprep.subr.bf16.mxu0 0
  %614 = vmatpush1.bf16.msra.mxu0 %v455
  %615 = vmatprep.subr.bf16.mxu0 0
  %616 = vmatpush1.bf16.msra.mxu0 %v454
  %617 = vmatprep.subr.bf16.mxu0 0
  %618 = vmatpush1.bf16.msra.mxu0 %v453
  %619 = vmatprep.subr.bf16.mxu0 0
  %620 = vmatpush1.bf16.msra.mxu0 %v452
  %621 = vmatprep.subr.bf16.mxu0 0
  %622 = vmatpush1.bf16.msra.mxu0 %v451
  %623 = vmatprep.subr.bf16.mxu0 0
  %624 = vmatpush1.bf16.msra.mxu0 %v450
  %625 = vmatprep.subr.bf16.mxu0 0
  %626 = vmatpush1.bf16.msra.mxu0 %v449
  %627 = vmatprep.subr.bf16.mxu0 0
  %628 = vmatpush2.bf16.msra.mxu0 %v464
  %629 = vmatprep.subr.bf16.mxu0 0
  %630 = vmatpush2.bf16.msra.mxu0 %v463
  %631 = vmatprep.subr.bf16.mxu0 0
  %632 = vmatpush2.bf16.msra.mxu0 %v462
  %633 = vmatprep.subr.bf16.mxu0 0
  %634 = vmatpush2.bf16.msra.mxu0 %v461
  %635 = vmatprep.subr.bf16.mxu0 0
  %636 = vmatpush2.bf16.msra.mxu0 %v460
  %637 = vmatprep.subr.bf16.mxu0 0
  %638 = vmatpush2.bf16.msra.mxu0 %v459
  %639 = vmatprep.subr.bf16.mxu0 0
  %640 = vmatpush2.bf16.msra.mxu0 %v458
  %641 = vmatprep.subr.bf16.mxu0 0
  %642 = vmatpush2.bf16.msra.mxu0 %v457
  %643 = vmatprep.mubr.bf16.mxu0 %v184
  %644 = vmatmul.mubr.bf16.gmra.mxu0 %v183
  %v645 = vpop.f32.mrf.mxu0
  %v646 = vadd.f32 %v605, %v645
  %v647 = vpop.f32.mrf.mxu0
  %v648 = vpop.f32.mrf.mxu0
  %v649 = vadd.f32 %v608, %v648
  %v650 = vpop.f32.mrf.mxu0
  %651 = vdwg.mxu0
  %652 = vmatprep.subr.bf16.mxu0 0
  %653 = vmatpush1.bf16.msra.mxu0 %v472
  %654 = vmatprep.subr.bf16.mxu0 0
  %655 = vmatpush1.bf16.msra.mxu0 %v471
  %656 = vmatprep.subr.bf16.mxu0 0
  %657 = vmatpush1.bf16.msra.mxu0 %v470
  %658 = vmatprep.subr.bf16.mxu0 0
  %659 = vmatpush1.bf16.msra.mxu0 %v469
  %660 = vmatprep.subr.bf16.mxu0 0
  %661 = vmatpush1.bf16.msra.mxu0 %v468
  %662 = vmatprep.subr.bf16.mxu0 0
  %663 = vmatpush1.bf16.msra.mxu0 %v467
  %664 = vmatprep.subr.bf16.mxu0 0
  %665 = vmatpush1.bf16.msra.mxu0 %v466
  %666 = vmatprep.subr.bf16.mxu0 0
  %667 = vmatpush1.bf16.msra.mxu0 %v465
  %668 = vmatprep.subr.bf16.mxu0 0
  %669 = vmatpush2.bf16.msra.mxu0 0
  %670 = vmatprep.subr.bf16.mxu0 0
  %671 = vmatpush2.bf16.msra.mxu0 0
  %672 = vmatprep.subr.bf16.mxu0 0
  %673 = vmatpush2.bf16.msra.mxu0 0
  %674 = vmatprep.subr.bf16.mxu0 0
  %675 = vmatpush2.bf16.msra.mxu0 0
  %676 = vmatprep.subr.bf16.mxu0 0
  %677 = vmatpush2.bf16.msra.mxu0 0
  %678 = vmatprep.subr.bf16.mxu0 0
  %679 = vmatpush2.bf16.msra.mxu0 0
  %680 = vmatprep.subr.bf16.mxu0 0
  %681 = vmatpush2.bf16.msra.mxu0 0
  %682 = vmatprep.subr.bf16.mxu0 0
  %683 = vmatpush2.bf16.msra.mxu0 0
  %684 = vmatprep.mubr.bf16.mxu0 0
  %685 = vmatmul.mubr.bf16.gmra.mxu0 %v185
  %v686 = vpop.f32.mrf.mxu0
  %v687 = vadd.f32 %v646, %v686
  %v688 = vpop.f32.mrf.mxu0
  %v689 = vpop.f32.mrf.mxu0
  %v690 = vadd.f32 %v649, %v689
  %v691 = vpop.f32.mrf.mxu0
  %692 = vdwg.mxu0
  %v693 = vmax.f32 %v687, 0.0
  %v694 = vmax.f32 %v690, 0.0
  %v695 = vpack.c.bf16 %v694, %v693
  %v696 = vld [vmem:[%s3] sm:$0xf]
  %v697 = vld [vmem:[%s3 + $0x4] sm:$0xf]
  %v698 = vld [vmem:[%s3 + $0x8] sm:$0xf]
  %v699 = vld [vmem:[%s3 + $0xc] sm:$0xf]
  %v700 = vld [vmem:[%s3 + $0x10] sm:$0xf]
  %v701 = vld [vmem:[%s3 + $0x14] sm:$0xf]
  %v702 = vld [vmem:[%s3 + $0x18] sm:$0xf]
  %v703 = vld [vmem:[%s3 + $0x1c] sm:$0xf]
  %v704 = vld [vmem:[%s3 + $0x20] sm:$0xf]
  %v705 = vld [vmem:[%s3 + $0x24] sm:$0xf]
  %v706 = vld [vmem:[%s3 + $0x28] sm:$0xf]
  %v707 = vld [vmem:[%s3 + $0x2c] sm:$0xf]
  %v708 = vld [vmem:[%s3 + $0x30] sm:$0xf]
  %v709 = vld [vmem:[%s3 + $0x34] sm:$0xf]
  %v710 = vld [vmem:[%s3 + $0x38] sm:$0xf]
  %v711 = vld [vmem:[%s3 + $0x3c] sm:$0xf]
  %v712 = vld [vmem:[%s4] sm:$0x1]
  %v714 = vlaneseq
  %v715 = vshrl.u32 %v714, 7
  %v716 = vsub.s32 0, %v715
  %v717 = vrot.slane %v712, %v716
  %v735 = vunpack.c.l.b16 %v696
  %v736 = vunpack.c.l.b16 %v697
  %v737 = vunpack.c.l.b16 %v698
  %v738 = vunpack.c.l.b16 %v699
  %v739 = vunpack.c.l.b16 %v700
  %v740 = vunpack.c.l.b16 %v701
  %v741 = vunpack.c.l.b16 %v702
  %v742 = vunpack.c.l.b16 %v703
  %v743 = vunpack.c.l.b16 %v704
  %v744 = vunpack.c.l.b16 %v705
  %v745 = vunpack.c.l.b16 %v706
  %v746 = vunpack.c.l.b16 %v707
  %v747 = vunpack.c.l.b16 %v708
  %v748 = vunpack.c.l.b16 %v709
  %v749 = vunpack.c.l.b16 %v710
  %v750 = vunpack.c.l.b16 %v711
  %v751 = vpack.c.b16 %v736, %v735
  %v752 = vpack.c.b16 %v738, %v737
  %v753 = vpack.c.b16 %v740, %v739
  %v754 = vpack.c.b16 %v742, %v741
  %v755 = vpack.c.b16 %v744, %v743
  %v756 = vpack.c.b16 %v746, %v745
  %v757 = vpack.c.b16 %v748, %v747
  %v758 = vpack.c.b16 %v750, %v749
  %767 = vmatprep.subr.bf16.mxu0 0
  %768 = vmatpush1.bf16.msra.mxu0 %v758
  %769 = vmatprep.subr.bf16.mxu0 0
  %770 = vmatpush1.bf16.msra.mxu0 %v757
  %771 = vmatprep.subr.bf16.mxu0 0
  %772 = vmatpush1.bf16.msra.mxu0 %v756
  %773 = vmatprep.subr.bf16.mxu0 0
  %774 = vmatpush1.bf16.msra.mxu0 %v755
  %775 = vmatprep.subr.bf16.mxu0 0
  %776 = vmatpush1.bf16.msra.mxu0 %v754
  %777 = vmatprep.subr.bf16.mxu0 0
  %778 = vmatpush1.bf16.msra.mxu0 %v753
  %779 = vmatprep.subr.bf16.mxu0 0
  %780 = vmatpush1.bf16.msra.mxu0 %v752
  %781 = vmatprep.subr.bf16.mxu0 0
  %782 = vmatpush1.bf16.msra.mxu0 %v751
  %783 = vmatprep.subr.bf16.mxu0 0
  %784 = vmatpush2.bf16.msra.mxu0 0
  %785 = vmatprep.subr.bf16.mxu0 0
  %786 = vmatpush2.bf16.msra.mxu0 0
  %787 = vmatprep.subr.bf16.mxu0 0
  %788 = vmatpush2.bf16.msra.mxu0 0
  %789 = vmatprep.subr.bf16.mxu0 0
  %790 = vmatpush2.bf16.msra.mxu0 0
  %791 = vmatprep.subr.bf16.mxu0 0
  %792 = vmatpush2.bf16.msra.mxu0 0
  %793 = vmatprep.subr.bf16.mxu0 0
  %794 = vmatpush2.bf16.msra.mxu0 0
  %795 = vmatprep.subr.bf16.mxu0 0
  %796 = vmatpush2.bf16.msra.mxu0 0
  %797 = vmatprep.subr.bf16.mxu0 0
  %798 = vmatpush2.bf16.msra.mxu0 0
  %799 = vmatprep.mubr.bf16.mxu0 0
  %800 = vmatmul.mubr.bf16.gmra.mxu0 %v695
  %v801 = vpop.f32.mrf.mxu0
  %v802 = vadd.f32 %v717, %v801
  %v803 = vpop.f32.mrf.mxu0
  %v804 = vpop.f32.mrf.mxu0
  %v805 = vadd.f32 %v717, %v804
  %v806 = vpop.f32.mrf.mxu0
  %807 = vdwg.mxu0
  %v808 = vmax.f32 %v802, 0.0
  %v809 = vmax.f32 %v805, 0.0
  %v810 = vpack.c.bf16 %v809, %v808
  %v811 = vld [vmem:[%s5] sm:$0xf]
  %v812 = vld [vmem:[%s5 + $0x4] sm:$0xf]
  %v813 = vld [vmem:[%s5 + $0x8] sm:$0xf]
  %v814 = vld [vmem:[%s5 + $0xc] sm:$0xf]
  %v815 = vld [vmem:[%s5 + $0x10] sm:$0xf]
  %v816 = vld [vmem:[%s5 + $0x14] sm:$0xf]
  %v817 = vld [vmem:[%s5 + $0x18] sm:$0xf]
  %v818 = vld [vmem:[%s5 + $0x1c] sm:$0xf]
  %v819 = vld [vmem:[%s5 + $0x20] sm:$0xf]
  %v820 = vld [vmem:[%s5 + $0x24] sm:$0xf]
  %v821 = vld [vmem:[%s5 + $0x28] sm:$0xf]
  %v822 = vld [vmem:[%s5 + $0x2c] sm:$0xf]
  %v823 = vld [vmem:[%s5 + $0x30] sm:$0xf]
  %v824 = vld [vmem:[%s5 + $0x34] sm:$0xf]
  %v825 = vld [vmem:[%s5 + $0x38] sm:$0xf]
  %v826 = vld [vmem:[%s5 + $0x3c] sm:$0xf]
  %v827 = vld [vmem:[%s6] sm:$0x1]
  %v829 = vlaneseq
  %v830 = vshrl.u32 %v829, 7
  %v831 = vsub.s32 0, %v830
  %v832 = vrot.slane %v827, %v831
  %v850 = vunpack.c.l.b16 %v811
  %v851 = vunpack.c.l.b16 %v812
  %v852 = vunpack.c.l.b16 %v813
  %v853 = vunpack.c.l.b16 %v814
  %v854 = vunpack.c.l.b16 %v815
  %v855 = vunpack.c.l.b16 %v816
  %v856 = vunpack.c.l.b16 %v817
  %v857 = vunpack.c.l.b16 %v818
  %v858 = vunpack.c.l.b16 %v819
  %v859 = vunpack.c.l.b16 %v820
  %v860 = vunpack.c.l.b16 %v821
  %v861 = vunpack.c.l.b16 %v822
  %v862 = vunpack.c.l.b16 %v823
  %v863 = vunpack.c.l.b16 %v824
  %v864 = vunpack.c.l.b16 %v825
  %v865 = vunpack.c.l.b16 %v826
  %v866 = vpack.c.b16 %v851, %v850
  %v867 = vpack.c.b16 %v853, %v852
  %v868 = vpack.c.b16 %v855, %v854
  %v869 = vpack.c.b16 %v857, %v856
  %v870 = vpack.c.b16 %v859, %v858
  %v871 = vpack.c.b16 %v861, %v860
  %v872 = vpack.c.b16 %v863, %v862
  %v873 = vpack.c.b16 %v865, %v864
  %882 = vmatprep.subr.bf16.mxu0 0
  %883 = vmatpush1.bf16.msra.mxu0 %v873
  %884 = vmatprep.subr.bf16.mxu0 0
  %885 = vmatpush1.bf16.msra.mxu0 %v872
  %886 = vmatprep.subr.bf16.mxu0 0
  %887 = vmatpush1.bf16.msra.mxu0 %v871
  %888 = vmatprep.subr.bf16.mxu0 0
  %889 = vmatpush1.bf16.msra.mxu0 %v870
  %890 = vmatprep.subr.bf16.mxu0 0
  %891 = vmatpush1.bf16.msra.mxu0 %v869
  %892 = vmatprep.subr.bf16.mxu0 0
  %893 = vmatpush1.bf16.msra.mxu0 %v868
  %894 = vmatprep.subr.bf16.mxu0 0
  %895 = vmatpush1.bf16.msra.mxu0 %v867
  %896 = vmatprep.subr.bf16.mxu0 0
  %897 = vmatpush1.bf16.msra.mxu0 %v866
  %898 = vmatprep.subr.bf16.mxu0 0
  %899 = vmatpush2.bf16.msra.mxu0 0
  %900 = vmatprep.subr.bf16.mxu0 0
  %901 = vmatpush2.bf16.msra.mxu0 0
  %902 = vmatprep.subr.bf16.mxu0 0
  %903 = vmatpush2.bf16.msra.mxu0 0
  %904 = vmatprep.subr.bf16.mxu0 0
  %905 = vmatpush2.bf16.msra.mxu0 0
  %906 = vmatprep.subr.bf16.mxu0 0
  %907 = vmatpush2.bf16.msra.mxu0 0
  %908 = vmatprep.subr.bf16.mxu0 0
  %909 = vmatpush2.bf16.msra.mxu0 0
  %910 = vmatprep.subr.bf16.mxu0 0
  %911 = vmatpush2.bf16.msra.mxu0 0
  %912 = vmatprep.subr.bf16.mxu0 0
  %913 = vmatpush2.bf16.msra.mxu0 0
  %914 = vmatprep.mubr.bf16.mxu0 0
  %915 = vmatmul.mubr.bf16.gmra.mxu0 %v810
  %v916 = vpop.f32.mrf.mxu0
  %v917 = vadd.f32 %v832, %v916
  %v918 = vpop.f32.mrf.mxu0
  %v919 = vpop.f32.mrf.mxu0
  %v920 = vadd.f32 %v832, %v919
  %v921 = vpop.f32.mrf.mxu0
  %922 = vdwg.mxu0
  %v923 = vlaneseq
  %v924 = vand.u32 %v923, 127
  %vm925 = vcmp.lt.s32.totalorder %v924, 4
  %v926 = vsel %vm925, %v917, -1e+30
  %v927 = vsel %vm925, %v920, -1e+30
  %928 = vmax.xlane.f32.xlu0 %v926
  %v929 = vpop.xlane.xlu0 %928
  %930 = vmax.xlane.f32.xlu0 %v927
  %v931 = vpop.xlane.xlu0 %930
  %v932 = vsub.f32 %v926, %v929
  %v933 = vsub.f32 %v927, %v931
  %v934 = vmul.f32 %v932, 1.442695
  %v935 = vpow.pop %v934
  %v936 = vmul.f32 %v933, 1.442695
  %v937 = vpow.pop %v936
  %938 = vadd.xlane.f32.xlu0 %v935
  %v939 = vpop.xlane.xlu0 %938
  %940 = vadd.xlane.f32.xlu0 %v937
  %v941 = vpop.xlane.xlu0 %940
  %v942 = vrcp.pop %v939
  %v943 = vrcp.pop %v941
  %v944 = vmul.f32 %v935, %v942
  %v945 = vmul.f32 %v937, %v943
  %v946 = vld [vmem:[%s7] sm:$0xff]
  %v947 = vld [vmem:[%s7 + $0x8] sm:$0xff]
  %950 = vrot.lane.b32.xlu0 %v946, 2
  %v951 = vpop.permute.xlu0 %950
  %952 = vrot.lane.b32.xlu0 %v947, 2
  %v953 = vpop.permute.xlu0 %952
  %v956 = vsub.f32 %v946, %v951
  %v957 = vsub.f32 %v947, %v953
  %959 = vset.pattern.permute.xlu0 2
  %960 = vperm.xlu0 %959, %v956
  %v961 = vpop.permute.xlu0 %960
  %964 = vset.pattern.permute.xlu0 2
  %965 = vperm.xlu0 %964, %v957
  %v966 = vpop.permute.xlu0 %965
  %968 = vset.pattern.permute.xlu0 3
  %969 = vperm.xlu0 %968, %v956
  %v970 = vpop.permute.xlu0 %969
  %972 = vset.pattern.permute.xlu0 3
  %973 = vperm.xlu0 %972, %v957
  %v974 = vpop.permute.xlu0 %973
  %976 = vset.pattern.permute.xlu0 0
  %977 = vperm.xlu0 %976, %v946
  %v978 = vpop.permute.xlu0 %977
  %980 = vset.pattern.permute.xlu0 0
  %981 = vperm.xlu0 %980, %v947
  %v982 = vpop.permute.xlu0 %981
  %v984 = vmul.f32 %v961, 0.5
  %v985 = vmul.f32 %v966, 0.5
  %v986 = vadd.f32 %v978, %v984
  %v987 = vadd.f32 %v982, %v985
  %988 = vset.pattern.permute.xlu0 1
  %989 = vperm.xlu0 %988, %v946
  %v990 = vpop.permute.xlu0 %989
  %992 = vset.pattern.permute.xlu0 1
  %993 = vperm.xlu0 %992, %v947
  %v994 = vpop.permute.xlu0 %993
  %v996 = vmul.f32 %v970, 0.5
  %v997 = vmul.f32 %v974, 0.5
  %v998 = vadd.f32 %v990, %v996
  %v999 = vadd.f32 %v994, %v997
  %v1000 = vmul.f32 %v917, 0.1
  %v1001 = vmul.f32 %v920, 0.1
  %v1002 = vmul.f32 %v917, 0.2
  %v1003 = vmul.f32 %v920, 0.2
  %v1004 = vmin.f32 %v1002, 4.1351666
  %v1005 = vmin.f32 %v1003, 4.1351666
  %v1006 = vmul.f32 %v1000, %v961
  %v1007 = vmul.f32 %v1001, %v966
  %v1008 = vadd.f32 %v1006, %v986
  %v1009 = vadd.f32 %v1007, %v987
  %v1010 = vmul.f32 %v1000, %v970
  %v1011 = vmul.f32 %v1001, %v974
  %v1012 = vadd.f32 %v1010, %v998
  %v1013 = vadd.f32 %v1011, %v999
  %v1014 = vmul.f32 %v1004, 1.442695
  %v1015 = vpow.pop %v1014
  %v1016 = vmul.f32 %v1005, 1.442695
  %v1017 = vpow.pop %v1016
  %v1018 = vmul.f32 %v1015, %v961
  %v1019 = vmul.f32 %v1017, %v966
  %v1020 = vmul.f32 %v1015, %v970
  %v1021 = vmul.f32 %v1017, %v974
  %v1022 = vmul.f32 %v1018, 0.5
  %v1023 = vmul.f32 %v1019, 0.5
  %1026 = vrot.lane.b32.xlu0 %v1022, 120
  %v1027 = vpop.permute.xlu0 %1026
  %1028 = vrot.lane.b32.xlu0 %v1023, 120
  %v1029 = vpop.permute.xlu0 %1028
  %v1032 = vsub.f32 %v1008, %v1027
  %v1033 = vsub.f32 %v1009, %v1029
  %v1034 = vmax.f32 %v1032, 0.0
  %v1035 = vmax.f32 %v1033, 0.0
  %v1036 = vmin.f32 %v1034, 16.0
  %v1037 = vmin.f32 %v1035, 16.0
  %v1038 = vadd.f32 %v1008, %v1027
  %v1039 = vadd.f32 %v1009, %v1029
  %v1040 = vmax.f32 %v1038, 0.0
  %v1041 = vmax.f32 %v1039, 0.0
  %v1042 = vmin.f32 %v1040, 16.0
  %v1043 = vmin.f32 %v1041, 16.0
  %v1044 = vmul.f32 %v1020, 0.5
  %v1045 = vmul.f32 %v1021, 0.5
  %1048 = vrot.lane.b32.xlu0 %v1044, 120
  %v1049 = vpop.permute.xlu0 %1048
  %1050 = vrot.lane.b32.xlu0 %v1045, 120
  %v1051 = vpop.permute.xlu0 %1050
  %v1054 = vsub.f32 %v1012, %v1049
  %v1055 = vsub.f32 %v1013, %v1051
  %v1056 = vmax.f32 %v1054, 0.0
  %v1057 = vmax.f32 %v1055, 0.0
  %v1058 = vmin.f32 %v1056, 16.0
  %v1059 = vmin.f32 %v1057, 16.0
  %v1060 = vadd.f32 %v1012, %v1049
  %v1061 = vadd.f32 %v1013, %v1051
  %v1062 = vmax.f32 %v1060, 0.0
  %v1063 = vmax.f32 %v1061, 0.0
  %v1064 = vmin.f32 %v1062, 16.0
  %v1065 = vmin.f32 %v1063, 16.0
  %v1066 = vsub.f32 %v1042, %v1036
  %v1067 = vsub.f32 %v1043, %v1037
  %vm1068 = vcmp.ge.f32.partialorder %v1066, 1.0
  %vm1069 = vcmp.ge.f32.partialorder %v1067, 1.0
  %v1070 = vsub.f32 %v1064, %v1058
  %v1071 = vsub.f32 %v1065, %v1059
  %vm1072 = vcmp.ge.f32.partialorder %v1070, 1.0
  %vm1073 = vcmp.ge.f32.partialorder %v1071, 1.0
  %v1074 = vsel %vm1072, 1, 0
  %v1075 = vsel %vm1073, 1, 0
  %1076 = vrot.lane.b32.xlu0 %v1074, 124
  %v1077 = vpop.permute.xlu0 %1076
  %1078 = vrot.lane.b32.xlu0 %v1075, 124
  %v1079 = vpop.permute.xlu0 %1078
  %vm1080 = vcmp.ne.s32.totalorder %v1077, 0
  %vm1081 = vcmp.ne.s32.totalorder %v1079, 0
  %vm1082 = vmand %vm1068, %vm1080
  %vm1083 = vmand %vm1069, %vm1081
  %v1084 = vsel %vm1082, 1, 0
  %v1085 = vsel %vm1083, 1, 0
  %v1086 = vcvt.s32.f32 %v1084
  %v1087 = vcvt.s32.f32 %v1085
  %1090 = vrot.lane.b32.xlu0 %v1042, 8
  %v1091 = vpop.permute.xlu0 %1090
  %1092 = vrot.lane.b32.xlu0 %v1043, 8
  %v1093 = vpop.permute.xlu0 %1092
  %1098 = vrot.lane.b32.xlu0 %v1064, 8
  %v1099 = vpop.permute.xlu0 %1098
  %1100 = vrot.lane.b32.xlu0 %v1065, 8
  %v1101 = vpop.permute.xlu0 %1100
  %1106 = vrot.lane.b32.xlu0 %v1086, 16
  %v1107 = vpop.permute.xlu0 %1106
  %1108 = vrot.lane.b32.xlu0 %v1087, 16
  %v1109 = vpop.permute.xlu0 %1108
  %vm1112 = vcmask 31744
  %v1113 = vsel %vm1112, %v944, %v1036
  %v1114 = vsel %vm1112, %v945, %v1037
  %vm1115 = vcmask 64512
  %v1116 = vsel %vm1115, %v1113, %v1058
  %v1117 = vsel %vm1115, %v1114, %v1059
  %vm1118 = vcmask 97280
  %v1119 = vsel %vm1118, %v1116, %v1091
  %v1120 = vsel %vm1118, %v1117, %v1093
  %vm1121 = vcmask 130048
  %v1122 = vsel %vm1121, %v1119, %v1099
  %v1123 = vsel %vm1121, %v1120, %v1101
  %vm1124 = vcmask 162816
  %v1125 = vsel %vm1124, %v1122, %v1107
  %v1126 = vsel %vm1124, %v1123, %v1109
  %vm1127 = vcmask 195584
  %v1128 = vsel %vm1127, %v1125, 0.0
  %v1129 = vsel %vm1127, %v1126, 0.0
  %1130 = vst [vmem:[%s8] sm:$0xff] %v1128
  %1131 = vst [vmem:[%s8 + $0x8] sm:$0xff] %v1129
  // Predicated region
  $region34: #{roi_heads_forward.1} parent=0 // pred_check
    _
  $region35: #{roi_heads_forward.1} parent=0 // pred_check_branch
    %1133 = sbr.rel (0) target = $region37
  $region36: #{roi_heads_forward.1} parent=0 // pred_region
    _
  $region37: #{roi_heads_forward.1} parent=0 // pred_fallthru
    _
  // Predicated region
  $region38: #{roi_heads_forward.1} parent=0 // pred_check
    _
  $region39: #{roi_heads_forward.1} parent=0 // pred_check_branch
    %1135 = sbr.rel (0) target = $region41
  $region40: #{roi_heads_forward.1} parent=0 // pred_region
    _
  $region41: #{roi_heads_forward.1} parent=0 // pred_fallthru
    _

</llo_original>
